<compile_context>
chip_gen: v7x
topology: tpu7x:2x2x1
jax: 0.10.0
libtpu: 0.0.40
codegen_flags: <defaults>
</compile_context>

<pallas_src>
import functools

import jax
import jax.numpy as jnp
from jax.experimental import pallas as pl
from jax.experimental.pallas import tpu as pltpu


def _row_losses(logits_ref, targets_ref, alpha):
    """Per-row label-smoothed CE loss for the current tile, shape [TN, 1] f32."""
    x = logits_ref[...]                                     # [TN, C] native dtype
    tn, c = x.shape
    off = alpha / (c - 1 if c > 1 else 1)

    # Row max is exact in the native dtype; f32 casts are folded into the
    # consumers below (no standalone [TN, C] f32 copy of a bf16 tile).
    m = jnp.max(x, axis=-1, keepdims=True)                  # [TN, 1]
    m32 = m.astype(jnp.float32)
    e = jnp.exp(x.astype(jnp.float32) - m32)                # EUP pass
    se = jnp.sum(e, axis=-1, keepdims=True)                 # [TN, 1]
    lse = m32 + jnp.log(se)                                 # logsumexp(x)
    sx = jnp.sum(x, axis=-1, keepdims=True, dtype=jnp.float32)   # sum_c x

    # Logit at the target class via a one-hot select applied directly to x.
    col_ids = jax.lax.broadcasted_iota(jnp.int32, (tn, c), 1)
    tgt = targets_ref[...]                                  # [TN, 1] int32
    x_t = jnp.sum(jnp.where(col_ids == tgt, x, jnp.zeros_like(x)),
                  axis=-1, keepdims=True, dtype=jnp.float32)

    # loss = -(sum_c true_dist_c * log_softmax(x)_c), in closed form.
    return off * (c * lse - sx) + (1.0 - alpha - off) * (lse - x_t)


def _ls_ce_rows_kernel(logits_ref, targets_ref, loss_ref, *, alpha):
    """Writes per-row losses for the current tile; invalid rows of a partial
    final block are never DMA'd back, so no masking is needed."""
    loss_ref[...] = _row_losses(logits_ref, targets_ref, alpha)   # [TN, 1]


def _vmem_capacity_bytes():
    try:
        cap = getattr(pltpu.get_tpu_info(), "vmem_capacity_bytes", None)
        if cap:
            return int(cap)
    except Exception:
        pass
    return 64 << 20   # conservative (v7x-sized) fallback


def _choose_rows_per_tile(n, c, itemsize, vmem_budget_bytes, max_rows_per_tile):
    # Bytes resident in VMEM per tile row:
    #   * double-buffered logits row:                      2 * C * itemsize
    #   * double-buffered (TN,1) i32 target col (lane-pads to 128):  2 * 512
    #   * double-buffered (TN,1) f32 loss output col:                2 * 512
    #   * in-kernel [TN, C] f32 temporaries (exp / one-hot select): ~2 * C * 4
    per_row = 2 * (c * itemsize + 512 + 512) + 2 * c * 4
    tn = int(vmem_budget_bytes // per_row)
    tn = max(8, (tn // 8) * 8)
    tn = min(tn, int(max_rows_per_tile))
    if n <= tn:
        return n          # single full-extent tile (block == full array dims)
    return tn


def label_smoothing_cross_entropy(logits, targets, alpha=0.1, reduction="mean",
                                  max_rows_per_tile=8192):
    """logits: [N, C] float (f32/bf16); targets: [N] int. Matches the PyTorch module."""
    logits = jnp.asarray(logits)
    n, c = logits.shape
    itemsize = jnp.dtype(logits.dtype).itemsize

    # Per-generation VMEM sizing: ~3/4 of physical VMEM as the scoped limit
    # (~48 MiB on v7x, ~96 MiB on v5e/v6e), ~4 MiB headroom for Mosaic
    # internal scratch / row-stat vregs when picking the tile.
    vmem_cap = _vmem_capacity_bytes()
    vmem_limit = min(max(int(vmem_cap * 3 // 4), 16 << 20), 112 << 20)
    vmem_budget = max(vmem_limit - (4 << 20), 8 << 20)

    tn = _choose_rows_per_tile(n, c, itemsize, vmem_budget, max_rows_per_tile)
    num_tiles = -(-n // tn)     # ragged final block handled by Pallas (no pad)

    targets_col = jnp.asarray(targets).reshape(-1).astype(jnp.int32).reshape(n, 1)

    kernel = functools.partial(_ls_ce_rows_kernel, alpha=float(alpha))
    loss = pl.pallas_call(
        kernel,
        grid=(num_tiles,),
        in_specs=[
            pl.BlockSpec((tn, c), lambda i: (i, 0)),   # logits row tile (native dtype)
            pl.BlockSpec((tn, 1), lambda i: (i, 0)),   # target column
        ],
        out_specs=pl.BlockSpec((tn, 1), lambda i: (i, 0)),
        out_shape=jax.ShapeDtypeStruct((n, 1), jnp.float32),
        compiler_params=pltpu.CompilerParams(
            dimension_semantics=("parallel",),         # disjoint tiles; uses both v7x TCs
            vmem_limit_bytes=int(vmem_limit)),
    )(logits, targets_col)

    loss = loss[:, 0]
    if reduction == "mean":
        return jnp.sum(loss) / n
    if reduction == "sum":
        return jnp.sum(loss)
    return loss


def _reference(logits, targets, alpha=0.1, reduction="mean"):
    c = logits.shape[-1]
    logits = logits.astype(jnp.float32)
    log_probs = jax.nn.log_softmax(logits, axis=-1)
    off = alpha / (c - 1 if c > 1 else 1)
    true_dist = jnp.full_like(log_probs, off)
    true_dist = true_dist.at[jnp.arange(logits.shape[0]), targets].set(1.0 - alpha)
    loss = -jnp.sum(true_dist * log_probs, axis=-1)
    if reduction == "mean":
        return loss.mean()
    if reduction == "sum":
        return loss.sum()
    return loss


if __name__ == "__main__":
    key = jax.random.PRNGKey(0)
    k1, k2, k3, k4 = jax.random.split(key, 4)

    # Small case: single tile covers the whole batch.
    N, C = 8, 32
    logits = jax.random.normal(k1, (N, C), dtype=jnp.float32)
    targets = jax.random.randint(k2, (N,), 0, C, dtype=jnp.int32)
    for red in ("mean", "sum", "none"):
        out = jax.block_until_ready(
            label_smoothing_cross_entropy(logits, targets, alpha=0.1, reduction=red))
        ref = _reference(logits, targets, alpha=0.1, reduction=red)
        assert jnp.allclose(out, ref, atol=1e-5, rtol=1e-5), (red, out, ref)

    # Multi-tile case with a ragged (un-padded) final block: N=20, TN=8 ->
    # grid of 3, last block has only 4 valid rows (exercises the partial-block
    # DMA path with no wrapper-side jnp.pad).
    N2 = 20
    logits2 = jax.random.normal(k3, (N2, C), dtype=jnp.float32)
    targets2 = jax.random.randint(k4, (N2,), 0, C, dtype=jnp.int32)
    for red in ("mean", "sum", "none"):
        out = jax.block_until_ready(
            label_smoothing_cross_entropy(logits2, targets2, alpha=0.1,
                                          reduction=red, max_rows_per_tile=8))
        ref = _reference(logits2, targets2, alpha=0.1, reduction=red)
        assert jnp.allclose(out, ref, atol=1e-5, rtol=1e-5), (red, out, ref)

    # bf16 logits: DMA'd as bf16 (half the HBM bytes); f32 casts are fused
    # into the exp/sum/select consumers inside the kernel.
    logits_bf16 = logits.astype(jnp.bfloat16)
    out = jax.block_until_ready(
        label_smoothing_cross_entropy(logits_bf16, targets, alpha=0.1, reduction="mean"))
    ref = _reference(logits_bf16.astype(jnp.float32), targets, alpha=0.1, reduction="mean")
    assert jnp.allclose(out, ref, atol=1e-4, rtol=1e-4), (out, ref)

    print("KERNEL_OK")
</pallas_src>

<mosaic_0001>
module attributes {stable_mosaic.version = 11 : i64} {
  func.func @_ls_ce_rows_kernel(%arg0: i32, %arg1: memref<8x32xf32, #tpu.memory_space<vmem>>, %arg2: memref<8x1xi32, #tpu.memory_space<vmem>>, %arg3: memref<8x1xf32, #tpu.memory_space<vmem>>) attributes {dimension_semantics = [#tpu.dimension_semantics<parallel>], iteration_bounds = array<i64: 1>, scalar_prefetch = 0 : i64, scratch_operands = 0 : i64, tpu.core_type = #tpu.core_type<tc>, window_params = [{transform_indices = @transform_0, window_bounds = array<i64: 8, 32>}, {transform_indices = @transform_1, window_bounds = array<i64: 8, 1>}, {transform_indices = @transform_2, window_bounds = array<i64: 8, 1>}]} {
    %c0 = arith.constant 0 : index
    %c0_0 = arith.constant 0 : index
    %0 = vector.load %arg1[%c0, %c0_0] : memref<8x32xf32, #tpu.memory_space<vmem>>, vector<8x32xf32>
    %cst = arith.constant dense<0xFF800000> : vector<8xf32>
    %1 = vector.multi_reduction <maximumf>, %0, %cst [1] : vector<8x32xf32> to vector<8xf32>
    %2 = vector.shape_cast %1 : vector<8xf32> to vector<8x1xf32>
    %3 = vector.broadcast %2 : vector<8x1xf32> to vector<8x32xf32>
    %4 = arith.subf %0, %3 : vector<8x32xf32>
    %5 = math.exp %4 : vector<8x32xf32>
    %cst_1 = arith.constant dense<0.000000e+00> : vector<8xf32>
    %6 = vector.multi_reduction <add>, %5, %cst_1 [1] : vector<8x32xf32> to vector<8xf32>
    %7 = vector.shape_cast %6 : vector<8xf32> to vector<8x1xf32>
    %8 = math.log %7 : vector<8x1xf32>
    %9 = arith.addf %2, %8 : vector<8x1xf32>
    %cst_2 = arith.constant dense<0.000000e+00> : vector<8xf32>
    %10 = vector.multi_reduction <add>, %0, %cst_2 [1] : vector<8x32xf32> to vector<8xf32>
    %11 = vector.shape_cast %10 : vector<8xf32> to vector<8x1xf32>
    %12 = tpu.iota {dimensions = array<i32: 1>} : vector<8x32xi32>
    %c0_3 = arith.constant 0 : index
    %c0_4 = arith.constant 0 : index
    %13 = vector.load %arg2[%c0_3, %c0_4] : memref<8x1xi32, #tpu.memory_space<vmem>>, vector<8x1xi32>
    %14 = vector.broadcast %13 : vector<8x1xi32> to vector<8x32xi32>
    %15 = arith.cmpi eq, %12, %14 : vector<8x32xi32>
    %cst_5 = arith.constant 0.000000e+00 : f32
    %16 = vector.broadcast %cst_5 : f32 to vector<8x32xf32>
    %17 = arith.select %15, %0, %16 : vector<8x32xi1>, vector<8x32xf32>
    %cst_6 = arith.constant dense<0.000000e+00> : vector<8xf32>
    %18 = vector.multi_reduction <add>, %17, %cst_6 [1] : vector<8x32xf32> to vector<8xf32>
    %19 = vector.shape_cast %18 : vector<8xf32> to vector<8x1xf32>
    %cst_7 = arith.constant 3.200000e+01 : f32
    %20 = vector.broadcast %cst_7 : f32 to vector<8x1xf32>
    %21 = arith.mulf %20, %9 : vector<8x1xf32>
    %22 = arith.subf %21, %11 : vector<8x1xf32>
    %cst_8 = arith.constant 0.0032258064 : f32
    %23 = vector.broadcast %cst_8 : f32 to vector<8x1xf32>
    %24 = arith.mulf %23, %22 : vector<8x1xf32>
    %25 = arith.subf %9, %19 : vector<8x1xf32>
    %cst_9 = arith.constant 0.896774172 : f32
    %26 = vector.broadcast %cst_9 : f32 to vector<8x1xf32>
    %27 = arith.mulf %26, %25 : vector<8x1xf32>
    %28 = arith.addf %24, %27 : vector<8x1xf32>
    %c0_10 = arith.constant 0 : index
    %c0_11 = arith.constant 0 : index
    %29 = vector.load %arg3[%c0_10, %c0_11] : memref<8x1xf32, #tpu.memory_space<vmem>>, vector<8x1xf32>
    tpu.vector_store %arg3[%c0_10, %c0_11], %28 {strides = array<i32>} : memref<8x1xf32, #tpu.memory_space<vmem>>, vector<8x1xf32>,
    return
  }
  func.func @transform_0(%arg0: i32) -> (i32, i32) {
    %c0_i32 = arith.constant 0 : i32
    %c0_i32_0 = arith.constant 0 : i32
    return %arg0, %c0_i32 : i32, i32
  }
  func.func @transform_1(%arg0: i32) -> (i32, i32) {
    %c0_i32 = arith.constant 0 : i32
    %c0_i32_0 = arith.constant 0 : i32
    return %arg0, %c0_i32 : i32, i32
  }
  func.func @transform_2(%arg0: i32) -> (i32, i32) {
    %c0_i32 = arith.constant 0 : i32
    %c0_i32_0 = arith.constant 0 : i32
    return %arg0, %c0_i32 : i32, i32
  }
}

</mosaic_0001>

<llo_original>
// kernel: tpu_custom_call.1
$region0: #{tpu_custom_call.1}
  #allocation0 [shape = 'u32[]', space=smem, size = 0x4, offset = 0x4, fixed_abs, tag = 'smem constant byte address 0x4 - core index']
  #allocation1 [shape = 'u32[144,128]{1,0:T(1,128)}', space=vmem, size = 0x12000, scoped, tag = 'internal scratch']
  %s0 = inlined_call_operand.vmem [shape: f32[8,32], index: 0, kind: input, shape index: {}]
  %s1 = inlined_call_operand.vmem [shape: s32[8,1], index: 1, kind: input, shape index: {}]
  %s2 = inlined_call_operand.vmem [shape: f32[8,1], index: 2, kind: output, shape index: {}]
  %s3 = sld [smem:[#allocation0]]
  $region18: #{tpu_custom_call.1} parent=0
    _
  %s5 = ssub.s32 1, %s3
  %s6 = scalar_select 0, %s5, %s3
  // Predicated region
  $region2: #{tpu_custom_call.1} parent=0 // pred_check
    _
  $region3: #{tpu_custom_call.1} parent=0 // pred_check_branch
    %8 = sbr.rel (0) target = $region5
  $region4: #{tpu_custom_call.1} parent=0 // pred_region
    _
  $region5: #{tpu_custom_call.1} parent=0 // pred_fallthru
    _
  // Predicated region
  $region6: #{tpu_custom_call.1} parent=0 // pred_check
    _
  $region7: #{tpu_custom_call.1} parent=0 // pred_check_branch
    %10 = sbr.rel (0) target = $region9
  $region8: #{tpu_custom_call.1} parent=0 // pred_region
    _
  $region9: #{tpu_custom_call.1} parent=0 // pred_fallthru
    _
  %v11 = vld [vmem:[%s0] sm:$0xff]
  %vm12 = vcmask 261120
  %v13 = vsel %vm12, %v11, -inf
  %14 = vmax.xlane.f32.xlu0 %v13
  %v15 = vpop.xlane.xlu0 %14
  %v16 = vsub.f32 %v11, %v15
  %v17 = vmul.f32 %v16, 1.442695
  %v18 = vpow.pop %v17
  %v19 = vsel %vm12, %v18, 0.0
  %20 = vadd.xlane.f32.xlu0 %v19
  %v21 = vpop.xlane.xlu0 %20
  %v22 = vlog2.pop %v21
  %v23 = vmul.f32 %v22, 0.6931472
  %v24 = vadd.f32 %v15, %v23
  %v25 = vsel %vm12, %v11, 0.0
  %26 = vadd.xlane.f32.xlu0 %v25
  %v27 = vpop.xlane.xlu0 %26
  %v28 = vlaneseq
  %v29 = vand.u32 %v28, 127
  %v30 = vld [vmem:[%s1] sm:$0xff]
  %31 = vset.pattern.permute.xlu0 0
  %32 = vperm.xlu0 %31, %v30
  %v33 = vpop.permute.xlu0 %32
  %vm34 = vcmp.eq.s32.totalorder %v29, %v33
  %v35 = vsel %vm34, %v11, 0.0
  %v36 = vsel %vm12, %v35, 0.0
  %37 = vadd.xlane.f32.xlu0 %v36
  %v38 = vpop.xlane.xlu0 %37
  %v39 = vmul.f32 %v24, 32.0
  %v40 = vsub.f32 %v39, %v27
  %v41 = vmul.f32 %v40, 0.0032258064
  %v42 = vsub.f32 %v24, %v38
  %v43 = vmul.f32 %v42, 0.8967742
  %v44 = vadd.f32 %v41, %v43
  %vm45 = vcmask 7168
  %46 = vst.msk [vmem:[%s2] sm:$0xff] %vm45, %v44
  // Predicated region
  $region10: #{tpu_custom_call.1} parent=0 // pred_check
    _
  $region11: #{tpu_custom_call.1} parent=0 // pred_check_branch
    %48 = sbr.rel (0) target = $region13
  $region12: #{tpu_custom_call.1} parent=0 // pred_region
    _
  $region13: #{tpu_custom_call.1} parent=0 // pred_fallthru
    _
  // Predicated region
  $region14: #{tpu_custom_call.1} parent=0 // pred_check
    _
  $region15: #{tpu_custom_call.1} parent=0 // pred_check_branch
    %50 = sbr.rel (0) target = $region17
  $region16: #{tpu_custom_call.1} parent=0 // pred_region
    _
  $region17: #{tpu_custom_call.1} parent=0 // pred_fallthru
    _

</llo_original>
